<compile_context>
chip_gen: v7x
topology: tpu7x:2x2x1
jax: 0.10.0
libtpu: 0.0.40
codegen_flags: <defaults>
</compile_context>

<pallas_src>
import numpy as np
import jax
import jax.numpy as jnp
from jax import lax
from jax.experimental import pallas as pl
from jax.experimental.pallas import tpu as pltpu


def make_rope_tables(dim, max_seq_len=512, dtype=jnp.float32):
    """Kernel-ready full-D interleaved tables (PyTorch __init__ analogue).

    cos_full[:, 2i] = cos_full[:, 2i+1] = cos_i
    sin_signed[:, 2i] = -sin_i,  sin_signed[:, 2i+1] = +sin_i
    so the forward is:  out = t * cos_full + pair_swap(t) * sin_signed
    """
    assert dim % 2 == 0
    inv_freq = 1.0 / (10000.0 ** (jnp.arange(0, dim, 2, dtype=jnp.float32) / dim))
    pos = jnp.arange(max_seq_len, dtype=jnp.float32)
    freqs = jnp.einsum("n,d->nd", pos, inv_freq)                  # (L, dim//2)
    sin = jnp.sin(freqs)
    cos = jnp.cos(freqs)
    cos_full = jnp.repeat(cos, 2, axis=-1)                        # c0 c0 c1 c1 ...
    sin_signed = jnp.stack([-sin, sin], axis=-1).reshape(max_seq_len, dim)  # -s0 s0 -s1 s1 ...
    return cos_full.astype(dtype), sin_signed.astype(dtype)


def _rope_kernel(t_ref, cos_ref, sin_ref, o_ref):
    # t_ref / o_ref: (BT, TS, D) activation tile.
    # cos_ref / sin_ref: (TS, D) full-D interleaved tables (activation dtype).
    bt, ts, d = t_ref.shape
    t3 = t_ref[...].astype(jnp.float32)          # upcast once (v5e has no bf16 VALU)

    # Pair swap t[..., 2i] <-> t[..., 2i+1] with two lane rotations (XLU slot,
    # free under the HBM roofline) + a parity select (VPU slack), on a 2-D
    # (rows, lanes) view.  pltpu.roll requires a non-negative axis.
    t2 = t3.reshape(bt * ts, d)
    fwd = pltpu.roll(t2, shift=d - 1, axis=1)    # fwd[:, i] = t2[:, (i + 1) % d]
    bwd = pltpu.roll(t2, shift=1, axis=1)        # bwd[:, i] = t2[:, (i - 1) % d]
    lane = lax.broadcasted_iota(jnp.int32, t2.shape, 1)
    swapped = jnp.where((lane & 1) == 0, fwd, bwd).reshape(bt, ts, d)

    cos = cos_ref[...].astype(jnp.float32)[None, :, :]   # broadcast over batch
    sin = sin_ref[...].astype(jnp.float32)[None, :, :]
    o_ref[...] = (t3 * cos + swapped * sin).astype(o_ref.dtype)


def rotary_position_embedding(t, cos_full, sin_signed, seqlen=None,
                              past_key_value_length=0, *, seq_tile=512,
                              donate_input=False):
    """Equivalent of RotaryPositionEmbedding.forward.

    t:          (B, S, D) float array
    cos_full:   (max_seq_len, D) interleaved cos table (activation dtype ok)
    sin_signed: (max_seq_len, D) interleaved, sign-folded sin table
    """
    B, S, D = t.shape
    if seqlen is None:
        seqlen = S
    assert seqlen == S, "seqlen must match the sequence length of t"
    assert D % 2 == 0
    assert cos_full.shape == sin_signed.shape and cos_full.shape[1] == D
    max_seq_len = cos_full.shape[0]
    if isinstance(past_key_value_length, int):
        assert past_key_value_length + seqlen <= max_seq_len, (
            "position range exceeds the precomputed table length")

    # Position-range slice (works for static or traced past_key_value_length).
    cos = lax.dynamic_slice_in_dim(cos_full, past_key_value_length, seqlen, axis=0)
    sin = lax.dynamic_slice_in_dim(sin_signed, past_key_value_length, seqlen, axis=0)

    itemsize = jnp.dtype(t.dtype).itemsize
    tbl_itemsize = jnp.dtype(cos_full.dtype).itemsize
    tile_target_bytes = 2 << 20                  # ~2 MiB activation tile / step

    # Sequence tile: full S when it fits, else a fixed multiple-of-8 tile with
    # a cdiv grid (Pallas masks the ragged last block).
    if S <= seq_tile:
        TS = S
    else:
        TS = max(8, (seq_tile // 8) * 8)
        while TS > 8 and TS * D * itemsize > tile_target_bytes:
            TS //= 2                             # stays a multiple of 8
    num_s = pl.cdiv(S, TS)

    # Batch blocking: fewer, larger grid steps, but keep >=2 steps when
    # possible so both v7x TensorCores get work.
    BT = max(1, min(B, tile_target_bytes // max(1, TS * D * itemsize)))
    if num_s == 1 and BT >= B and B > 1:
        BT = (B + 1) // 2
    num_b = pl.cdiv(B, BT)

    # Batch innermost => the table block index is invariant across the inner
    # loop, so Pallas fetches each cos/sin tile once per seq block.
    grid = (num_s, num_b)
    act_spec = pl.BlockSpec((BT, TS, D), lambda s, b: (b, s, 0))
    tbl_spec = pl.BlockSpec((TS, D), lambda s, b: (s, 0))

    # Double-buffered in/out activation tiles + table tiles, plus headroom;
    # capped at 48 MiB to leave room inside v7x's 64 MiB physical VMEM.
    act_tile = BT * TS * D * itemsize
    tbl_tile = TS * D * tbl_itemsize
    needed = 2 * (2 * act_tile + 2 * tbl_tile) + (4 << 20)
    vmem_limit = int(min(max(needed, 16 << 20), 48 << 20))

    cost = pl.CostEstimate(
        flops=4 * B * S * D,
        transcendentals=0,
        # Activations read + written once; tables fetched once per seq block.
        bytes_accessed=2 * B * S * D * itemsize + 2 * num_s * TS * D * tbl_itemsize,
    )

    return pl.pallas_call(
        _rope_kernel,
        out_shape=jax.ShapeDtypeStruct((B, S, D), t.dtype),
        grid=grid,
        in_specs=[act_spec, tbl_spec, tbl_spec],
        out_specs=act_spec,
        compiler_params=pltpu.CompilerParams(
            dimension_semantics=("parallel", "parallel"),
            vmem_limit_bytes=vmem_limit,
        ),
        cost_estimate=cost,
        input_output_aliases=({0: 0} if donate_input else {}),
    )(t, cos, sin)


def _reference(t, dim, max_seq_len, seqlen, past=0):
    """Numpy re-implementation of the PyTorch module's forward."""
    inv_freq = 1.0 / (10000.0 ** (np.arange(0, dim, 2, dtype=np.float64) / dim))
    pos = np.arange(max_seq_len, dtype=np.float64)
    freqs = np.einsum("n,d->nd", pos, inv_freq)
    sin = np.sin(freqs)[past:past + seqlen].astype(np.float32)
    cos = np.cos(freqs)[past:past + seqlen].astype(np.float32)
    t = np.asarray(t, dtype=np.float32)
    t1 = t[..., 0::2]
    t2 = t[..., 1::2]
    return np.stack([t1 * cos - t2 * sin, t1 * sin + t2 * cos], axis=-1).reshape(t.shape)


if __name__ == "__main__":
    B, S, D = 2, 8, 128          # small shapes, lane-dense head dim (128 lanes)
    max_seq_len = 16

    key = jax.random.PRNGKey(0)
    x = jax.random.normal(key, (B, S, D), dtype=jnp.float32)

    # f32 activations use f32 tables.
    cos_f32, sin_f32 = make_rope_tables(D, max_seq_len, dtype=jnp.float32)

    out = jax.block_until_ready(
        rotary_position_embedding(x, cos_f32, sin_f32, seqlen=S))
    ref = _reference(x, D, max_seq_len, seqlen=S, past=0)
    np.testing.assert_allclose(np.asarray(out), ref, rtol=1e-4, atol=1e-4)

    # f32 path with a KV-cache offset.
    out_p = jax.block_until_ready(
        rotary_position_embedding(x, cos_f32, sin_f32, seqlen=S,
                                  past_key_value_length=3))
    ref_p = _reference(x, D, max_seq_len, seqlen=S, past=3)
    np.testing.assert_allclose(np.asarray(out_p), ref_p, rtol=1e-4, atol=1e-4)

    # bf16 activations use bf16 tables (half the table HBM bytes); the kernel
    # upcasts to f32 internally and casts back only at the store.
    cos_bf, sin_bf = make_rope_tables(D, max_seq_len, dtype=jnp.bfloat16)
    x_bf16 = x.astype(jnp.bfloat16)
    out_bf = jax.block_until_ready(
        rotary_position_embedding(x_bf16, cos_bf, sin_bf, seqlen=S))
    ref_bf = _reference(np.asarray(x_bf16.astype(jnp.float32)), D, max_seq_len,
                        seqlen=S, past=0)
    np.testing.assert_allclose(np.asarray(out_bf).astype(np.float32), ref_bf,
                               rtol=5e-2, atol=5e-2)

    print("KERNEL_OK")
</pallas_src>

<mosaic_0001>
module attributes {stable_mosaic.version = 11 : i64} {
  func.func @_rope_kernel(%arg0: i32, %arg1: i32, %arg2: memref<1x8x128xf32, #tpu.memory_space<vmem>>, %arg3: memref<8x128xf32, #tpu.memory_space<vmem>>, %arg4: memref<8x128xf32, #tpu.memory_space<vmem>>, %arg5: memref<1x8x128xf32, #tpu.memory_space<vmem>>) attributes {dimension_semantics = [#tpu.dimension_semantics<parallel>, #tpu.dimension_semantics<parallel>], iteration_bounds = array<i64: 1, 2>, scalar_prefetch = 0 : i64, scratch_operands = 0 : i64, tpu.core_type = #tpu.core_type<tc>, window_params = [{transform_indices = @transform_0, window_bounds = array<i64: 1, 8, 128>}, {transform_indices = @transform_1, window_bounds = array<i64: 8, 128>}, {transform_indices = @transform_2, window_bounds = array<i64: 8, 128>}, {transform_indices = @transform_3, window_bounds = array<i64: 1, 8, 128>}]} {
    %c0 = arith.constant 0 : index
    %c0_0 = arith.constant 0 : index
    %c0_1 = arith.constant 0 : index
    %0 = vector.load %arg2[%c0, %c0_0, %c0_1] : memref<1x8x128xf32, #tpu.memory_space<vmem>>, vector<1x8x128xf32>
    %1 = vector.shape_cast %0 : vector<1x8x128xf32> to vector<8x128xf32>
    %c127_i32 = arith.constant 127 : i32
    %2 = tpu.dynamic_rotate %1 by %c127_i32 dim 1 : vector<8x128xf32>, i32 -> vector<8x128xf32>
    %c1_i32 = arith.constant 1 : i32
    %3 = tpu.dynamic_rotate %1 by %c1_i32 dim 1 : vector<8x128xf32>, i32 -> vector<8x128xf32>
    %4 = tpu.iota {dimensions = array<i32: 1>} : vector<8x128xi32>
    %c1_i32_2 = arith.constant 1 : i32
    %5 = vector.broadcast %c1_i32_2 : i32 to vector<8x128xi32>
    %6 = arith.andi %4, %5 : vector<8x128xi32>
    %c0_i32 = arith.constant 0 : i32
    %7 = vector.broadcast %c0_i32 : i32 to vector<8x128xi32>
    %8 = arith.cmpi eq, %6, %7 : vector<8x128xi32>
    %9 = arith.select %8, %2, %3 : vector<8x128xi1>, vector<8x128xf32>
    %10 = vector.shape_cast %9 : vector<8x128xf32> to vector<1x8x128xf32>
    %c0_3 = arith.constant 0 : index
    %c0_4 = arith.constant 0 : index
    %11 = vector.load %arg3[%c0_3, %c0_4] : memref<8x128xf32, #tpu.memory_space<vmem>>, vector<8x128xf32>
    %12 = vector.shape_cast %11 : vector<8x128xf32> to vector<1x8x128xf32>
    %c0_5 = arith.constant 0 : index
    %c0_6 = arith.constant 0 : index
    %13 = vector.load %arg4[%c0_5, %c0_6] : memref<8x128xf32, #tpu.memory_space<vmem>>, vector<8x128xf32>
    %14 = vector.shape_cast %13 : vector<8x128xf32> to vector<1x8x128xf32>
    %15 = arith.mulf %0, %12 : vector<1x8x128xf32>
    %16 = arith.mulf %10, %14 : vector<1x8x128xf32>
    %17 = arith.addf %15, %16 : vector<1x8x128xf32>
    %c0_7 = arith.constant 0 : index
    %c0_8 = arith.constant 0 : index
    %c0_9 = arith.constant 0 : index
    %18 = vector.load %arg5[%c0_7, %c0_8, %c0_9] : memref<1x8x128xf32, #tpu.memory_space<vmem>>, vector<1x8x128xf32>
    tpu.vector_store %arg5[%c0_7, %c0_8, %c0_9], %17 {strides = array<i32>} : memref<1x8x128xf32, #tpu.memory_space<vmem>>, vector<1x8x128xf32>,
    return
  }
  func.func @transform_0(%arg0: i32, %arg1: i32) -> (i32, i32, i32) {
    %c0_i32 = arith.constant 0 : i32
    %c0_i32_0 = arith.constant 0 : i32
    return %arg1, %arg0, %c0_i32 : i32, i32, i32
  }
  func.func @transform_1(%arg0: i32, %arg1: i32) -> (i32, i32) {
    %c0_i32 = arith.constant 0 : i32
    %c0_i32_0 = arith.constant 0 : i32
    return %arg0, %c0_i32 : i32, i32
  }
  func.func @transform_2(%arg0: i32, %arg1: i32) -> (i32, i32) {
    %c0_i32 = arith.constant 0 : i32
    %c0_i32_0 = arith.constant 0 : i32
    return %arg0, %c0_i32 : i32, i32
  }
  func.func @transform_3(%arg0: i32, %arg1: i32) -> (i32, i32, i32) {
    %c0_i32 = arith.constant 0 : i32
    %c0_i32_0 = arith.constant 0 : i32
    return %arg1, %arg0, %c0_i32 : i32, i32, i32
  }
}

</mosaic_0001>

<llo_original>
// kernel: tpu_custom_call.1
$region0: #{tpu_custom_call.1}
  #allocation0 [shape = 'u32[]', space=smem, size = 0x4, offset = 0x4, fixed_abs, tag = 'smem constant byte address 0x4 - core index']
  #allocation1 [shape = 'u32[144,128]{1,0:T(1,128)}', space=vmem, size = 0x12000, scoped, tag = 'internal scratch']
  %s0 = inlined_call_operand.hbm [shape: f32[2,8,128], index: 0, kind: input, shape index: {}]
  %s1 = inlined_call_operand.hbm [shape: f32[8,128], index: 1, kind: input, shape index: {}]
  %s2 = inlined_call_operand.hbm [shape: f32[8,128], index: 2, kind: input, shape index: {}]
  %s3 = inlined_call_operand.hbm [shape: f32[2,8,128], index: 3, kind: output, shape index: {}]
  %s4 = sld [smem:[#allocation0]]
  $region57: #{tpu_custom_call.1} parent=0
    _
  %s6 = ssub.s32 1, %s4
  %s7 = scalar_select 0, %s6, %s4
  $region1: #{tpu_custom_call.1} parent=0
    #allocation2 [shape = 'u8[8192]{0}', space=vmem, size = 0x2000, scoped, tag = 'input window, operand 0']
    #allocation3 [shape = 's32[2]{0}', space=sflag, size = 0x8, scoped, tag = 'scoped memory for tpu_custom_call.1']
    #allocation4 [shape = 's32[2]{0}', space=sflag, size = 0x8, scoped, tag = 'scoped memory for tpu_custom_call.1']
    #allocation5 [shape = 'u8[4096]{0}', space=vmem, size = 0x1000, scoped, tag = 'input window, operand 1, single buffered']
    #allocation6 [shape = 's32[1]{0}', space=sflag, size = 0x4, scoped, tag = 'scoped memory for tpu_custom_call.1']
    #allocation7 [shape = 'u8[4096]{0}', space=vmem, size = 0x1000, scoped, tag = 'input window, operand 2, single buffered']
    #allocation8 [shape = 'u8[8192]{0}', space=vmem, size = 0x2000, scoped, tag = 'output window, operand 0']
    %8 = vsyncpa [#allocation3], 0
    %s9 = scalar_lea.sflag [#allocation3], 1
    %10 = vsyncpa %s9, 0
    %11 = vsyncpa [#allocation6], 0
    %12 = vsyncpa [#allocation4], 0
    %s13 = scalar_lea.sflag [#allocation4], 1
    %14 = vsyncpa %s13, 0
    loop: start=0, step=1, limit=4
    $region2: #{tpu_custom_call.1} parent=1 // loop_pre_header
      _
    $region3: #{tpu_custom_call.1} parent=1 // loop_header
      %s16 = sphi 0, %s20
      %p17 = scmp.ge.s32.totalorder %s16, 4
      %s23 = sphi 0, %s35
      %s24 = sphi 0, %s31
      %s25 = sphi 0, %s23
      %s26 = sphi 0, %s24
      %s27 = sphi 0, %s25
      %s28 = sphi 0, %s26
      %s40 = sphi 0, %s42
      %s43 = sphi 0, %s40
      %s44 = sphi 0, %s43
      %s60 = sphi 0, %s44
      %s66 = sphi 0, %s68
      %s69 = sphi 0, %s66
      %s70 = sphi 0, %s69
      %s86 = sphi 0, %s70
      %s92 = sphi 0, %s94
      %s95 = sphi 0, %s92
      %s96 = sphi 0, %s95
      %s112 = sphi 0, %s96
      %s120 = sphi 0, %s122
      %s123 = sphi 0, %s120
      %s124 = sphi 0, %s123
      %s140 = sphi 0, %s124
    $region4: #{tpu_custom_call.1} parent=1 // loop_header_branch
      %19 = sbr.rel (%p17) target = $region8
    $region5: #{tpu_custom_call.1} parent=1 // loop_body
      %s21 = ssub.s32 %s16, 1
      %s22 = ssub.s32 %s16, 2
      %s29 = sadd.s32 1, %s24
      %p30 = scmp.ge.s32.totalorder %s29, 2
      %s31 = scalar_select %p30, 0, %s29
      %s32 = sadd.s32 1, %s23
      %s33 = scalar_select %p30, %s32, %s23
      %p34 = scmp.ge.s32.totalorder %s33, 1
      %s35 = scalar_select %p34, 0, %s33
      %s36 = ssub.s32 %s24, %s31
      %s37 = ssub.s32 %s23, %s35
      %s38 = sor.u32 %s36, %s37
      %p39 = scmp.eq.s32.totalorder %s38, 0
      %s41 = sadd.s32 %s40, 1
      %s42 = scalar_select %p39, %s40, %s41
      %p45 = pneg %p39
      %p46 = scmp.eq.s32.totalorder %s16, 1
      %p47 = por %p45, %p46
      %p48 = scmp.ne.s32.totalorder %s40, %s43
      %p49 = scmp.eq.s32.totalorder %s16, 0
      %p50 = por %p48, %p49
      %p51 = scmp.ne.s32.totalorder %s40, %s43
      %p52 = scmp.eq.s32.totalorder %s21, 1
      %p53 = por %p51, %p52
      %p54 = scmp.ne.s32.totalorder %s43, %s44
      %p55 = scmp.eq.s32.totalorder %s21, 0
      %p56 = por %p54, %p55
      %p57 = scmp.ne.s32.totalorder %s43, %s44
      %p58 = scmp.eq.s32.totalorder %s22, 1
      %p59 = por %p57, %p58
      %p61 = scmp.ne.s32.totalorder %s44, %s60
      %p62 = scmp.eq.s32.totalorder %s22, 0
      %p63 = por %p61, %p62
      %s64 = ssub.s32 %s23, %s35
      %p65 = scmp.eq.s32.totalorder %s64, 0
      %s67 = sadd.s32 %s66, 1
      %s68 = scalar_select %p65, %s66, %s67
      %p71 = pneg %p65
      %p72 = scmp.eq.s32.totalorder %s16, 1
      %p73 = por %p71, %p72
      %p74 = scmp.ne.s32.totalorder %s66, %s69
      %p75 = scmp.eq.s32.totalorder %s16, 0
      %p76 = por %p74, %p75
      %p77 = scmp.ne.s32.totalorder %s66, %s69
      %p78 = scmp.eq.s32.totalorder %s21, 1
      %p79 = por %p77, %p78
      %p80 = scmp.ne.s32.totalorder %s69, %s70
      %p81 = scmp.eq.s32.totalorder %s21, 0
      %p82 = por %p80, %p81
      %p83 = scmp.ne.s32.totalorder %s69, %s70
      %p84 = scmp.eq.s32.totalorder %s22, 1
      %p85 = por %p83, %p84
      %p87 = scmp.ne.s32.totalorder %s70, %s86
      %p88 = scmp.eq.s32.totalorder %s22, 0
      %p89 = por %p87, %p88
      %s90 = ssub.s32 %s23, %s35
      %p91 = scmp.eq.s32.totalorder %s90, 0
      %s93 = sadd.s32 %s92, 1
      %s94 = scalar_select %p91, %s92, %s93
      %p97 = pneg %p91
      %p98 = scmp.eq.s32.totalorder %s16, 1
      %p99 = por %p97, %p98
      %p100 = scmp.ne.s32.totalorder %s92, %s95
      %p101 = scmp.eq.s32.totalorder %s16, 0
      %p102 = por %p100, %p101
      %p103 = scmp.ne.s32.totalorder %s92, %s95
      %p104 = scmp.eq.s32.totalorder %s21, 1
      %p105 = por %p103, %p104
      %p106 = scmp.ne.s32.totalorder %s95, %s96
      %p107 = scmp.eq.s32.totalorder %s21, 0
      %p108 = por %p106, %p107
      %p109 = scmp.ne.s32.totalorder %s95, %s96
      %p110 = scmp.eq.s32.totalorder %s22, 1
      %p111 = por %p109, %p110
      %p113 = scmp.ne.s32.totalorder %s96, %s112
      %p114 = scmp.eq.s32.totalorder %s22, 0
      %p115 = por %p113, %p114
      %s116 = ssub.s32 %s24, %s31
      %s117 = ssub.s32 %s23, %s35
      %s118 = sor.u32 %s116, %s117
      %p119 = scmp.eq.s32.totalorder %s118, 0
      %s121 = sadd.s32 %s120, 1
      %s122 = scalar_select %p119, %s120, %s121
      %p125 = pneg %p119
      %p126 = scmp.eq.s32.totalorder %s16, 1
      %p127 = por %p125, %p126
      %p128 = scmp.ne.s32.totalorder %s120, %s123
      %p129 = scmp.eq.s32.totalorder %s16, 0
      %p130 = por %p128, %p129
      %p131 = scmp.ne.s32.totalorder %s120, %s123
      %p132 = scmp.eq.s32.totalorder %s21, 1
      %p133 = por %p131, %p132
      %p134 = scmp.ne.s32.totalorder %s123, %s124
      %p135 = scmp.eq.s32.totalorder %s21, 0
      %p136 = por %p134, %p135
      %p137 = scmp.ne.s32.totalorder %s123, %s124
      %p138 = scmp.eq.s32.totalorder %s22, 1
      %p139 = por %p137, %p138
      %p141 = scmp.ne.s32.totalorder %s124, %s140
      %p142 = scmp.eq.s32.totalorder %s22, 0
      %p143 = por %p141, %p142
      %p144 = scmp.le.s32.totalorder 1, %s16
      %p145 = scmp.lt.s32.totalorder %s16, 3
      %p146 = pnand %p144, %p145
      %p147 = pneg %p146
      // Predicated region
      $region9: #{tpu_custom_call.1} parent=5 // pred_check
        _
      $region10: #{tpu_custom_call.1} parent=5 // pred_check_branch
        %149 = sbr.rel (%p146) target = $region12
      $region11: #{tpu_custom_call.1} parent=5 // pred_region
        %s150 = ssub.s32 %s16, 1
        // Predicated region
        $region13: #{tpu_custom_call.1} parent=11 // pred_check
          %p151 = pneg %p82
        $region14: #{tpu_custom_call.1} parent=11 // pred_check_branch
          %153 = sbr.rel (%p151) target = $region16
        $region15: #{tpu_custom_call.1} parent=11 // pred_region
          %s155 = ssub.s32 128, 128
          %156 = vsyncadd [#allocation6], %s155
          %s157 = smul.addr %s25, 128
          %s158 = scalar_lea.hbm %s1, %s157
          %s160 = sshll.u32 [#allocation5], 4
          %s161 = int_to_ptr.vmem [resolvable:$true] %s160
          %163 = dma.hbm_to_vmem [thread:$0]  %s158, 128, %s161, [#allocation6]
        $region16: #{tpu_custom_call.1} parent=11 // pred_fallthru
          _
        // Predicated region
        $region17: #{tpu_custom_call.1} parent=11 // pred_check
          %p164 = pneg %p108
        $region18: #{tpu_custom_call.1} parent=11 // pred_check_branch
          %166 = sbr.rel (%p164) target = $region20
        $region19: #{tpu_custom_call.1} parent=11 // pred_region
          %s168 = ssub.s32 128, 128
          %169 = vsyncadd [#allocation6], %s168
          %s170 = smul.addr %s25, 128
          %s171 = scalar_lea.hbm %s2, %s170
          %s173 = sshll.u32 [#allocation7], 4
          %s174 = int_to_ptr.vmem [resolvable:$true] %s173
          %176 = dma.hbm_to_vmem [thread:$0]  %s171, 128, %s174, [#allocation6]
        $region20: #{tpu_custom_call.1} parent=11 // pred_fallthru
          _
      $region12: #{tpu_custom_call.1} parent=5 // pred_fallthru
        _
      %p177 = scmp.lt.s32.totalorder %s16, 2
      // Predicated region
      $region21: #{tpu_custom_call.1} parent=5 // pred_check
        %p178 = pneg %p177
      $region22: #{tpu_custom_call.1} parent=5 // pred_check_branch
        %180 = sbr.rel (%p178) target = $region24
      $region23: #{tpu_custom_call.1} parent=5 // pred_region
        // Predicated region
        $region25: #{tpu_custom_call.1} parent=23 // pred_check
          %p181 = pneg %p50
        $region26: #{tpu_custom_call.1} parent=23 // pred_check_branch
          %183 = sbr.rel (%p181) target = $region28
        $region27: #{tpu_custom_call.1} parent=23 // pred_region
          %s184 = sand.u32 %s40, 1
          %s185 = scalar_lea.sflag [#allocation3], %s184
          %s186 = sand.u32 %s40, 1
          %s187 = smul.addr %s186, 8
          %s188 = scalar_lea.vmem [#allocation2], %s187
          %s190 = ssub.s32 128, 128
          %191 = vsyncadd %s185, %s190
          %s192 = sadd.s32 %s23, %s24
          %s193 = smul.addr %s192, 128
          %s194 = scalar_lea.hbm %s0, %s193
          %s196 = sshll.u32 %s188, 4
          %s197 = int_to_ptr.vmem [resolvable:$true] %s196
          %199 = dma.hbm_to_vmem [thread:$0]  %s194, 128, %s197, %s185
        $region28: #{tpu_custom_call.1} parent=23 // pred_fallthru
          _
      $region24: #{tpu_custom_call.1} parent=5 // pred_fallthru
        _
      %p200 = scmp.le.s32.totalorder 1, %s16
      %p201 = scmp.lt.s32.totalorder %s16, 3
      %p202 = pnand %p200, %p201
      %p203 = pneg %p202
      // Predicated region
      $region29: #{tpu_custom_call.1} parent=5 // pred_check
        _
      $region30: #{tpu_custom_call.1} parent=5 // pred_check_branch
        %205 = sbr.rel (%p202) target = $region32
      $region31: #{tpu_custom_call.1} parent=5 // pred_region
        %s206 = ssub.s32 %s16, 1
        %s207 = sand.u32 %s43, 1
        %s208 = scalar_lea.sflag [#allocation3], %s207
        %s209 = sand.u32 %s43, 1
        %s210 = smul.addr %s209, 8
        %s211 = scalar_lea.vmem [#allocation2], %s210
        // Predicated region
        $region33: #{tpu_custom_call.1} parent=31 // pred_check
          %p212 = pneg %p56
        $region34: #{tpu_custom_call.1} parent=31 // pred_check_branch
          %214 = sbr.rel (%p212) target = $region36
        $region35: #{tpu_custom_call.1} parent=31 // pred_region
          %215 = dma.done %s208, 128
        $region36: #{tpu_custom_call.1} parent=31 // pred_fallthru
          _
        // Predicated region
        $region37: #{tpu_custom_call.1} parent=31 // pred_check
          %p216 = pneg %p82
        $region38: #{tpu_custom_call.1} parent=31 // pred_check_branch
          %218 = sbr.rel (%p216) target = $region40
        $region39: #{tpu_custom_call.1} parent=31 // pred_region
          %219 = dma.done [#allocation6], 128
        $region40: #{tpu_custom_call.1} parent=31 // pred_fallthru
          _
        // Predicated region
        $region41: #{tpu_custom_call.1} parent=31 // pred_check
          %p220 = pneg %p108
        $region42: #{tpu_custom_call.1} parent=31 // pred_check_branch
          %222 = sbr.rel (%p220) target = $region44
        $region43: #{tpu_custom_call.1} parent=31 // pred_region
          %223 = dma.done [#allocation6], 128
        $region44: #{tpu_custom_call.1} parent=31 // pred_fallthru
          _
        %s224 = sand.u32 %s43, 1
        %s225 = scalar_lea.sflag [#allocation3], %s224
        %s226 = sand.u32 %s43, 1
        %s227 = smul.addr %s226, 8
        %s228 = scalar_lea.vmem [#allocation2], %s227
        %p229 = pneg %p56
        %p230 = pneg %p53
        %p231 = pneg %p82
        %p232 = pneg %p79
        %p233 = pneg %p108
        %p234 = pneg %p105
        %p235 = pneg %p136
        %p236 = pneg %p133
        %s237 = sand.u32 %s123, 1
        %s238 = scalar_lea.sflag [#allocation4], %s237
        %s239 = sand.u32 %s123, 1
        %s240 = smul.addr %s239, 8
        %s241 = scalar_lea.vmem [#allocation8], %s240
        %v242 = vld [vmem:[%s211] sm:$0xff]
        %243 = vrot.lane.b32.xlu0 %v242, 127
        %v244 = vpop.permute.xlu0 %243
        %245 = vrot.lane.b32.xlu0 %v242, 1
        %v246 = vpop.permute.xlu0 %245
        %v247 = vlaneseq
        %v248 = vand.u32 %v247, 127
        %v249 = vand.u32 %v248, 1
        %vm250 = vcmp.eq.s32.totalorder %v249, 0
        %v251 = vsel %vm250, %v244, %v246
        %v252 = vld [vmem:[#allocation5] sm:$0xff]
        %v253 = vld [vmem:[#allocation7] sm:$0xff]
        %v254 = vmul.f32 %v242, %v252
        %v255 = vmul.f32 %v251, %v253
        %v256 = vadd.f32 %v254, %v255
        %257 = vst [vmem:[%s241] sm:$0xff] %v256
        %s258 = sand.u32 %s123, 1
        %s259 = scalar_lea.sflag [#allocation4], %s258
        %s260 = sand.u32 %s123, 1
        %s261 = smul.addr %s260, 8
        %s262 = scalar_lea.vmem [#allocation8], %s261
        // Predicated region
        $region45: #{tpu_custom_call.1} parent=31 // pred_check
          %p263 = pneg %p133
        $region46: #{tpu_custom_call.1} parent=31 // pred_check_branch
          %265 = sbr.rel (%p263) target = $region48
        $region47: #{tpu_custom_call.1} parent=31 // pred_region
          %s267 = ssub.s32 128, 128
          %268 = vsyncadd %s259, %s267
          %s269 = sadd.s32 %s25, %s26
          %s270 = smul.addr %s269, 128
          %s271 = scalar_lea.hbm %s3, %s270
          %s273 = sshll.u32 %s262, 4
          %s274 = int_to_ptr.vmem [resolvable:$true] %s273
          %276 = dma.vmem_to_hbm [thread:$0]  %s274, 128, %s271, %s259
        $region48: #{tpu_custom_call.1} parent=31 // pred_fallthru
          _
      $region32: #{tpu_custom_call.1} parent=5 // pred_fallthru
        _
      %p277 = scmp.le.s32.totalorder 2, %s16
      // Predicated region
      $region49: #{tpu_custom_call.1} parent=5 // pred_check
        %p278 = pneg %p277
      $region50: #{tpu_custom_call.1} parent=5 // pred_check_branch
        %280 = sbr.rel (%p278) target = $region52
      $region51: #{tpu_custom_call.1} parent=5 // pred_region
        %s281 = ssub.s32 %s16, 2
        // Predicated region
        $region53: #{tpu_custom_call.1} parent=51 // pred_check
          %p282 = pneg %p139
        $region54: #{tpu_custom_call.1} parent=51 // pred_check_branch
          %284 = sbr.rel (%p282) target = $region56
        $region55: #{tpu_custom_call.1} parent=51 // pred_region
          %s285 = sand.u32 %s124, 1
          %s286 = scalar_lea.sflag [#allocation4], %s285
          %s287 = sand.u32 %s124, 1
          %s288 = smul.addr %s287, 8
          %s289 = scalar_lea.vmem [#allocation8], %s288
          %290 = dma.done %s286, 128
        $region56: #{tpu_custom_call.1} parent=51 // pred_fallthru
          _
      $region52: #{tpu_custom_call.1} parent=5 // pred_fallthru
        _
    $region6: #{tpu_custom_call.1} parent=1 // loop_footer
      %s20 = sadd.s32 1, %s16
    $region7: #{tpu_custom_call.1} parent=1 // loop_footer_branch
      %15 = sbr.rel target = $region3
    $region8: #{tpu_custom_call.1} parent=1 // loop_exit
      _
    %291 = vsyncpa [#allocation3], 1
    %s292 = scalar_lea.sflag [#allocation3], 1
    %293 = vsyncpa %s292, 1
    %294 = vsyncpa [#allocation6], 1
    %295 = vsyncpa [#allocation4], 1
    %s296 = scalar_lea.sflag [#allocation4], 1
    %297 = vsyncpa %s296, 1

</llo_original>
